<compile_context>
chip_gen: v6e
topology: v6e:2x2x1
jax: 0.10.0
libtpu: 0.0.40
codegen_flags: <defaults>
</compile_context>

<pallas_src>
import functools

import jax
import jax.numpy as jnp
from jax import lax
from jax.experimental import pallas as pl
from jax.experimental.pallas import tpu as pltpu


def _round_up(x, m):
    return ((x + m - 1) // m) * m


def _pick_group(L, n_hidden):
    """Largest G in (8,4,2,1) dividing L, preferring a lane-dense G*n_hidden
    close to 256 (fills the 256-wide MXU on v6e/v7x; still unmasked on v5e)."""
    cands = [g for g in (8, 4, 2, 1) if L % g == 0]

    def score(g):
        nw = g * n_hidden
        return ((nw % 128) != 0, abs(nw - 256))

    return min(cands, key=score)


def _pick_tiling(mg, max_rows):
    """Pick (tile_rows, padded_rows, chunk_rows): prefer zero row padding,
    keep tiles chunkable, respect the requested max tile size."""
    max_rows = max(8, _round_up(int(max_rows), 8))
    mg8 = _round_up(mg, 8)
    if mg8 <= max_rows:
        tile = mg8 if mg8 <= 1024 else _round_up(mg8, 256)
    else:
        n_tiles = -(-mg8 // max_rows)
        tile = _round_up(-(-mg8 // n_tiles), 8)
        if tile > 1024:
            tile = _round_up(tile, 256)
    n_tiles = -(-mg8 // tile)
    chunk = tile if tile <= 1024 else (512 if tile % 512 == 0 else 256)
    return tile, tile * n_tiles, chunk


# ---------------------------------------------------------------------------
# Phase 1: per-channel sum / sum-of-squares of the conv output, accumulated
# across M-tiles (inner 'arbitrary' axis) into a (8, Nw) resident block per
# core-split (outer 'parallel' axis -> megacore shard on v7x).
# ---------------------------------------------------------------------------
def _stats_kernel(core_ref, halo_ref, wc_ref, wh_ref, sum_ref, sq_ref, *,
                  chunk, cdtype):
    @pl.when(pl.program_id(1) == 0)
    def _init():
        sum_ref[...] = jnp.zeros_like(sum_ref)
        sq_ref[...] = jnp.zeros_like(sq_ref)

    wc = wc_ref[...]
    wh = wh_ref[...]
    nw = sum_ref.shape[1]
    n_chunks = core_ref.shape[0] // chunk

    def body(i, carry):
        s, q = carry
        r0 = pl.multiple_of(i * chunk, chunk)
        xc = core_ref[pl.ds(r0, chunk), :].astype(cdtype)
        xh = halo_ref[pl.ds(r0, chunk), :].astype(cdtype)
        y = jnp.dot(xc, wc, preferred_element_type=jnp.float32)
        y = y + jnp.dot(xh, wh, preferred_element_type=jnp.float32)
        s = s + jnp.sum(y, axis=0, keepdims=True)
        q = q + jnp.sum(y * y, axis=0, keepdims=True)
        return s, q

    zero = jnp.zeros((1, nw), jnp.float32)
    s, q = lax.fori_loop(0, n_chunks, body, (zero, zero))
    sum_ref[0:1, :] += s
    sq_ref[0:1, :] += q


# ---------------------------------------------------------------------------
# Phase 2: recompute the conv matmul per tile, apply folded BN affine + ReLU,
# store a lane-dense (tile_r, G*n_hidden) block in compute_dtype.
# ---------------------------------------------------------------------------
def _apply_kernel(core_ref, halo_ref, wc_ref, wh_ref, scale_ref, shift_ref,
                  o_ref, *, chunk, cdtype):
    wc = wc_ref[...]
    wh = wh_ref[...]
    scale = scale_ref[...]
    shift = shift_ref[...]
    n_chunks = o_ref.shape[0] // chunk

    def body(i, carry):
        r0 = pl.multiple_of(i * chunk, chunk)
        xc = core_ref[pl.ds(r0, chunk), :].astype(cdtype)
        xh = halo_ref[pl.ds(r0, chunk), :].astype(cdtype)
        y = jnp.dot(xc, wc, preferred_element_type=jnp.float32)
        y = y + jnp.dot(xh, wh, preferred_element_type=jnp.float32)
        y = y * scale + shift
        o_ref[pl.ds(r0, chunk), :] = jnp.maximum(y, 0.0).astype(o_ref.dtype)
        return carry

    lax.fori_loop(0, n_chunks, body, 0)


def ttoken_embedding(x, conv_w, conv_b, gamma, beta, *,
                     compute_dtype=jnp.bfloat16, out_dtype=None,
                     tile_rows=2048, group_size=None, eps=1e-5):
    """x: (B, L, n_l, n_in) -> (B, L, n_hidden).  conv_w: (n_hidden, n_in, 3, n_l)."""
    # The conv bias is exactly cancelled by the batch-statistic BatchNorm mean
    # subtraction (training-mode forward), so it is a mathematical no-op here.
    # NOTE: if this module is ever run in eval mode (running stats), conv_b
    # must be reinstated.
    del conv_b
    B, L, n_l, n_in = x.shape
    n_hidden = conv_w.shape[0]
    D = n_l * n_in
    out_dtype = compute_dtype if out_dtype is None else out_dtype

    if group_size is None:
        G = _pick_group(L, n_hidden)
    else:
        assert L % int(group_size) == 0
        G = int(group_size)
    # TODO(synk): when L is not a multiple of 4/8 this falls back to narrow
    # (masked-store) output blocks; padding the time axis with stats-masked
    # rows would keep the output lane-dense for those shapes.
    groups = L // G
    Mg = B * groups
    Kc = G * D                 # core matmul K
    Nw = G * n_hidden          # matmul N (lane-dense: 256 for the default G=8)

    # ---- layout glue (cheap): core rows are a pure reshape of x (no transpose,
    # no copy -- the conv weight is permuted to x's natural (n_l, n_in) feature
    # order instead); halos are a tiny (Mg, 2D) strided gather written directly
    # in compute_dtype. ------------------------------------------------------
    feat = x.reshape(B, L, D)
    core = feat.reshape(Mg, Kc)
    lefts = jnp.concatenate([feat[:, :1], feat[:, G - 1:L - 1:G]], axis=1)
    rights = jnp.concatenate([feat[:, G:L:G], feat[:, L - 1:]], axis=1)
    halo = jnp.concatenate([lefts, rights], axis=2).reshape(Mg, 2 * D)
    halo = halo.astype(compute_dtype)

    # conv weight -> banded grouped-matmul weights in x's natural feature order:
    #   wk[k][il*n_in + ic, oc] = conv_w[oc, ic, k, il]
    wk = jnp.transpose(conv_w, (2, 3, 1, 0)).reshape(3, D, n_hidden)
    wk = wk.astype(jnp.float32)
    wc = jnp.zeros((G, D, G, n_hidden), jnp.float32)
    for j in range(G):                 # output position inside the group
        for k in range(3):             # conv tap
            s = j - 1 + k              # input position inside the group
            if 0 <= s < G:
                wc = wc.at[s, :, j, :].set(wk[k])
    wc = wc.reshape(Kc, Nw).astype(compute_dtype)
    wh = jnp.zeros((2, D, G, n_hidden), jnp.float32)
    wh = wh.at[0, :, 0, :].set(wk[0])          # left halo -> first output slot
    wh = wh.at[1, :, G - 1, :].set(wk[2])      # right halo -> last output slot
    wh = wh.reshape(2 * D, Nw).astype(compute_dtype)

    # ---- row tiling (prefer zero padding so the trailing slice is free) -----
    tile_r, Mg_pad, chunk = _pick_tiling(Mg, tile_rows)
    if Mg_pad != Mg:
        # zero rows contribute nothing to the BN sums (bias was dropped).
        core = jnp.pad(core, ((0, Mg_pad - Mg), (0, 0)))
        halo = jnp.pad(halo, ((0, Mg_pad - Mg), (0, 0)))
    n_tiles = Mg_pad // tile_r
    n_split = 2 if (n_tiles >= 2 and n_tiles % 2 == 0) else 1  # v7x 2-TC split
    t2 = n_tiles // n_split

    vmem_limit = 32 * 1024 * 1024
    params_p1 = pltpu.CompilerParams(
        dimension_semantics=("parallel", "arbitrary"),
        vmem_limit_bytes=vmem_limit)
    params_p2 = pltpu.CompilerParams(
        dimension_semantics=("parallel",),
        vmem_limit_bytes=vmem_limit)

    # ---- phase 1: global per-channel sum / sum-of-squares -------------------
    stats_fn = functools.partial(_stats_kernel, chunk=chunk, cdtype=compute_dtype)
    stat_spec = pl.BlockSpec((8, Nw), lambda c, i: (c, 0))
    sum_y, sum_sq = pl.pallas_call(
        stats_fn,
        out_shape=(jax.ShapeDtypeStruct((8 * n_split, Nw), jnp.float32),
                   jax.ShapeDtypeStruct((8 * n_split, Nw), jnp.float32)),
        grid=(n_split, t2),
        in_specs=[pl.BlockSpec((tile_r, Kc), lambda c, i: (c * t2 + i, 0)),
                  pl.BlockSpec((tile_r, 2 * D), lambda c, i: (c * t2 + i, 0)),
                  pl.BlockSpec((Kc, Nw), lambda c, i: (0, 0)),
                  pl.BlockSpec((2 * D, Nw), lambda c, i: (0, 0))],
        out_specs=(stat_spec, stat_spec),
        compiler_params=params_p1,
    )(core, halo, wc, wh)

    # ---- fold BN into per-channel scale/shift (tiny wrapper math) -----------
    # TODO(synk): E[y^2]-E[y]^2 in f32 can cancel badly when |mean| >> std for
    # very large B*L; a shifted / Welford-style accumulation would be more robust.
    count = jnp.float32(B * L)
    s1 = sum_y.sum(axis=0).reshape(G, n_hidden).sum(axis=0)
    s2 = sum_sq.sum(axis=0).reshape(G, n_hidden).sum(axis=0)
    mean = s1 / count
    var = jnp.maximum(s2 / count - mean * mean, 0.0)   # biased var (BN train fwd)
    scale = gamma.astype(jnp.float32) * lax.rsqrt(var + eps)
    shift = beta.astype(jnp.float32) - mean * scale
    scale_t = jnp.tile(scale, G).reshape(1, Nw)
    shift_t = jnp.tile(shift, G).reshape(1, Nw)

    # ---- phase 2: recompute conv, normalize + ReLU, lane-dense bf16 store ---
    apply_fn = functools.partial(_apply_kernel, chunk=chunk, cdtype=compute_dtype)
    out = pl.pallas_call(
        apply_fn,
        out_shape=jax.ShapeDtypeStruct((Mg_pad, Nw), out_dtype),
        grid=(n_tiles,),
        in_specs=[pl.BlockSpec((tile_r, Kc), lambda i: (i, 0)),
                  pl.BlockSpec((tile_r, 2 * D), lambda i: (i, 0)),
                  pl.BlockSpec((Kc, Nw), lambda i: (0, 0)),
                  pl.BlockSpec((2 * D, Nw), lambda i: (0, 0)),
                  pl.BlockSpec((1, Nw), lambda i: (0, 0)),
                  pl.BlockSpec((1, Nw), lambda i: (0, 0))],
        out_specs=pl.BlockSpec((tile_r, Nw), lambda i: (i, 0)),
        compiler_params=params_p2,
    )(core, halo, wc, wh, scale_t, shift_t)

    if Mg_pad != Mg:
        out = out[:Mg]
    return out.reshape(B, groups, G, n_hidden).reshape(B, L, n_hidden)


def ttoken_reference(x, conv_w, conv_b, gamma, beta, eps=1e-5):
    """Pure-JAX reference mirroring the PyTorch forward."""
    xc = jnp.transpose(x, (0, 3, 1, 2))                              # (B, n_in, L, n_l)
    xc = jnp.pad(xc, ((0, 0), (0, 0), (1, 1), (0, 0)), mode='edge')  # replicate pad
    y = lax.conv_general_dilated(xc, conv_w, window_strides=(1, 1), padding='VALID',
                                 dimension_numbers=('NCHW', 'OIHW', 'NCHW'))
    y = y + conv_b.reshape(1, -1, 1, 1)
    y = y[..., 0]                                                    # (B, n_hidden, L)
    mean = jnp.mean(y, axis=(0, 2), keepdims=True)
    var = jnp.mean((y - mean) ** 2, axis=(0, 2), keepdims=True)
    y = (y - mean) * lax.rsqrt(var + eps)
    y = y * gamma.reshape(1, -1, 1) + beta.reshape(1, -1, 1)
    y = jnp.maximum(y, 0.0)
    return jnp.transpose(y, (0, 2, 1))                               # (B, L, n_hidden)


def _make_params(key, n_in, n_hidden, n_l):
    kw, kb = jax.random.split(key)
    fan_in = n_in * 3 * n_l
    std = (2.0 / fan_in) ** 0.5     # kaiming_normal_(fan_in, leaky_relu a=0)
    conv_w = std * jax.random.normal(kw, (n_hidden, n_in, 3, n_l), dtype=jnp.float32)
    bound = 1.0 / fan_in ** 0.5
    conv_b = jax.random.uniform(kb, (n_hidden,), minval=-bound, maxval=bound,
                                dtype=jnp.float32)
    gamma = jnp.ones((n_hidden,), jnp.float32)
    beta = jnp.zeros((n_hidden,), jnp.float32)
    return conv_w, conv_b, gamma, beta


if __name__ == "__main__":
    key = jax.random.PRNGKey(0)
    k0, k1, k2 = jax.random.split(key, 3)

    # ---- small shape, f32 strict check -------------------------------------
    B, L, n_l, n_in, n_hidden = 2, 8, 4, 4, 32
    x = jax.random.normal(k0, (B, L, n_l, n_in), dtype=jnp.float32)
    conv_w, conv_b, gamma, beta = _make_params(k1, n_in, n_hidden, n_l)

    out_f32 = jax.block_until_ready(
        ttoken_embedding(x, conv_w, conv_b, gamma, beta,
                         compute_dtype=jnp.float32))
    ref = jax.block_until_ready(ttoken_reference(x, conv_w, conv_b, gamma, beta))
    assert out_f32.shape == (B, L, n_hidden), out_f32.shape
    assert jnp.allclose(out_f32, ref, atol=2e-3, rtol=2e-3), \
        float(jnp.max(jnp.abs(out_f32 - ref)))

    # ---- same shape, default bf16 path (bf16-rounded-input reference) -------
    out_bf16 = jax.block_until_ready(
        ttoken_embedding(x, conv_w, conv_b, gamma, beta))
    xb = x.astype(jnp.bfloat16).astype(jnp.float32)
    wb = conv_w.astype(jnp.bfloat16).astype(jnp.float32)
    ref_b = jax.block_until_ready(ttoken_reference(xb, wb, conv_b, gamma, beta))
    assert out_bf16.shape == (B, L, n_hidden), out_bf16.shape
    assert jnp.allclose(out_bf16.astype(jnp.float32), ref_b, atol=2e-2, rtol=2e-2), \
        float(jnp.max(jnp.abs(out_bf16.astype(jnp.float32) - ref_b)))

    # ---- multi-tile / split-stats path (forces n_tiles=2, 2-way phase-1 split)
    B2, L2 = 4, 256
    x2 = jax.random.normal(k2, (B2, L2, n_l, n_in), dtype=jnp.float32)
    out2 = jax.block_until_ready(
        ttoken_embedding(x2, conv_w, conv_b, gamma, beta, tile_rows=64))
    x2b = x2.astype(jnp.bfloat16).astype(jnp.float32)
    ref2 = jax.block_until_ready(ttoken_reference(x2b, wb, conv_b, gamma, beta))
    assert out2.shape == (B2, L2, n_hidden), out2.shape
    assert jnp.allclose(out2.astype(jnp.float32), ref2, atol=2e-2, rtol=2e-2), \
        float(jnp.max(jnp.abs(out2.astype(jnp.float32) - ref2)))

    print("KERNEL_OK")
</pallas_src>

<mosaic_0001>
module attributes {stable_mosaic.version = 11 : i64} {
  func.func @_stats_kernel(%arg0: i32, %arg1: i32, %arg2: memref<8x128xf32, #tpu.memory_space<vmem>>, %arg3: memref<8x32xf32, #tpu.memory_space<vmem>>, %arg4: memref<128x256xf32, #tpu.memory_space<vmem>>, %arg5: memref<32x256xf32, #tpu.memory_space<vmem>>, %arg6: memref<8x256xf32, #tpu.memory_space<vmem>>, %arg7: memref<8x256xf32, #tpu.memory_space<vmem>>) attributes {dimension_semantics = [#tpu.dimension_semantics<parallel>, #tpu.dimension_semantics<arbitrary>], iteration_bounds = array<i64: 1, 1>, scalar_prefetch = 0 : i64, scratch_operands = 0 : i64, tpu.core_type = #tpu.core_type<tc>, window_params = [{transform_indices = @transform_0, window_bounds = array<i64: 8, 128>}, {transform_indices = @transform_1, window_bounds = array<i64: 8, 32>}, {pipeline_mode = #tpu.pipeline_mode<synchronous>, transform_indices = @transform_2, window_bounds = array<i64: 128, 256>}, {pipeline_mode = #tpu.pipeline_mode<synchronous>, transform_indices = @transform_3, window_bounds = array<i64: 32, 256>}, {transform_indices = @transform_4, window_bounds = array<i64: 8, 256>}, {transform_indices = @transform_5, window_bounds = array<i64: 8, 256>}]} {
    %c0_i32 = arith.constant 0 : i32
    %0 = arith.cmpi eq, %arg1, %c0_i32 : i32
    %1 = arith.extui %0 : i1 to i32
    %c0_i32_0 = arith.constant 0 : i32
    %2 = arith.cmpi ne, %1, %c0_i32_0 : i32
    scf.if %2 {
      %cst_19 = arith.constant 0.000000e+00 : f32
      %28 = vector.broadcast %cst_19 : f32 to vector<8x256xf32>
      %c0_20 = arith.constant 0 : index
      %c0_21 = arith.constant 0 : index
      %29 = vector.load %arg6[%c0_20, %c0_21] : memref<8x256xf32, #tpu.memory_space<vmem>>, vector<8x256xf32>
      tpu.vector_store %arg6[%c0_20, %c0_21], %28 {strides = array<i32>} : memref<8x256xf32, #tpu.memory_space<vmem>>, vector<8x256xf32>,
      %cst_22 = arith.constant 0.000000e+00 : f32
      %30 = vector.broadcast %cst_22 : f32 to vector<8x256xf32>
      %c0_23 = arith.constant 0 : index
      %c0_24 = arith.constant 0 : index
      %31 = vector.load %arg7[%c0_23, %c0_24] : memref<8x256xf32, #tpu.memory_space<vmem>>, vector<8x256xf32>
      tpu.vector_store %arg7[%c0_23, %c0_24], %30 {strides = array<i32>} : memref<8x256xf32, #tpu.memory_space<vmem>>, vector<8x256xf32>,
    } else {
    }
    %c0 = arith.constant 0 : index
    %c0_1 = arith.constant 0 : index
    %3 = vector.load %arg4[%c0, %c0_1] : memref<128x256xf32, #tpu.memory_space<vmem>>, vector<128x256xf32>
    %c0_2 = arith.constant 0 : index
    %c0_3 = arith.constant 0 : index
    %4 = vector.load %arg5[%c0_2, %c0_3] : memref<32x256xf32, #tpu.memory_space<vmem>>, vector<32x256xf32>
    %cst = arith.constant 0.000000e+00 : f32
    %5 = vector.broadcast %cst : f32 to vector<1x256xf32>
    %c0_i32_4 = arith.constant 0 : i32
    %c8_i32 = arith.constant 8 : i32
    %6 = arith.muli %c0_i32_4, %c8_i32 : i32
    %7 = tpu.assume_multiple %6, 8 : i32
    %8 = arith.index_cast %7 : i32 to index
    %c0_5 = arith.constant 0 : index
    %9 = vector.load %arg2[%8, %c0_5] : memref<8x128xf32, #tpu.memory_space<vmem>>, vector<8x128xf32>
    %10 = arith.index_cast %7 : i32 to index
    %c0_6 = arith.constant 0 : index
    %11 = vector.load %arg3[%10, %c0_6] : memref<8x32xf32, #tpu.memory_space<vmem>>, vector<8x32xf32>
    %cst_7 = arith.constant dense<0.000000e+00> : vector<8x256xf32>
    %12 = tpu.matmul %9, %3, %cst_7 {dimension_numbers = #tpu.dot_dimension_numbers<[1], [0], [0], [1], [0, 0, 1, 1], [], []>} : vector<8x128xf32>, vector<128x256xf32>, vector<8x256xf32> -> vector<8x256xf32>
    %cst_8 = arith.constant dense<0.000000e+00> : vector<8x256xf32>
    %13 = tpu.matmul %11, %4, %cst_8 {dimension_numbers = #tpu.dot_dimension_numbers<[1], [0], [0], [1], [0, 0, 1, 1], [], []>} : vector<8x32xf32>, vector<32x256xf32>, vector<8x256xf32> -> vector<8x256xf32>
    %14 = arith.addf %12, %13 : vector<8x256xf32>
    %cst_9 = arith.constant dense<0.000000e+00> : vector<256xf32>
    %15 = vector.multi_reduction <add>, %14, %cst_9 [0] : vector<8x256xf32> to vector<256xf32>
    %16 = vector.shape_cast %15 : vector<256xf32> to vector<1x256xf32>
    %17 = arith.addf %5, %16 : vector<1x256xf32>
    %18 = arith.mulf %14, %14 : vector<8x256xf32>
    %cst_10 = arith.constant dense<0.000000e+00> : vector<256xf32>
    %19 = vector.multi_reduction <add>, %18, %cst_10 [0] : vector<8x256xf32> to vector<256xf32>
    %20 = vector.shape_cast %19 : vector<256xf32> to vector<1x256xf32>
    %21 = arith.addf %5, %20 : vector<1x256xf32>
    %c1_i32 = arith.constant 1 : i32
    %c0_11 = arith.constant 0 : index
    %c0_12 = arith.constant 0 : index
    %22 = vector.load %arg6[%c0_11, %c0_12] : memref<8x256xf32, #tpu.memory_space<vmem>>, vector<1x256xf32>
    %23 = arith.addf %22, %17 : vector<1x256xf32>
    %c0_13 = arith.constant 0 : index
    %c0_14 = arith.constant 0 : index
    %24 = vector.load %arg6[%c0_13, %c0_14] : memref<8x256xf32, #tpu.memory_space<vmem>>, vector<1x256xf32>
    tpu.vector_store %arg6[%c0_13, %c0_14], %23 {strides = array<i32>} : memref<8x256xf32, #tpu.memory_space<vmem>>, vector<1x256xf32>,
    %c0_15 = arith.constant 0 : index
    %c0_16 = arith.constant 0 : index
    %25 = vector.load %arg7[%c0_15, %c0_16] : memref<8x256xf32, #tpu.memory_space<vmem>>, vector<1x256xf32>
    %26 = arith.addf %25, %21 : vector<1x256xf32>
    %c0_17 = arith.constant 0 : index
    %c0_18 = arith.constant 0 : index
    %27 = vector.load %arg7[%c0_17, %c0_18] : memref<8x256xf32, #tpu.memory_space<vmem>>, vector<1x256xf32>
    tpu.vector_store %arg7[%c0_17, %c0_18], %26 {strides = array<i32>} : memref<8x256xf32, #tpu.memory_space<vmem>>, vector<1x256xf32>,
    return
  }
  func.func @transform_0(%arg0: i32, %arg1: i32) -> (i32, i32) {
    %c1_i32 = arith.constant 1 : i32
    %0 = arith.muli %arg0, %c1_i32 : i32
    %1 = arith.addi %0, %arg1 : i32
    %c0_i32 = arith.constant 0 : i32
    %c0_i32_0 = arith.constant 0 : i32
    return %1, %c0_i32 : i32, i32
  }
  func.func @transform_1(%arg0: i32, %arg1: i32) -> (i32, i32) {
    %c1_i32 = arith.constant 1 : i32
    %0 = arith.muli %arg0, %c1_i32 : i32
    %1 = arith.addi %0, %arg1 : i32
    %c0_i32 = arith.constant 0 : i32
    %c0_i32_0 = arith.constant 0 : i32
    return %1, %c0_i32 : i32, i32
  }
  func.func @transform_2(%arg0: i32, %arg1: i32) -> (i32, i32) {
    %c0_i32 = arith.constant 0 : i32
    %c0_i32_0 = arith.constant 0 : i32
    %c0_i32_1 = arith.constant 0 : i32
    return %c0_i32, %c0_i32_0 : i32, i32
  }
  func.func @transform_3(%arg0: i32, %arg1: i32) -> (i32, i32) {
    %c0_i32 = arith.constant 0 : i32
    %c0_i32_0 = arith.constant 0 : i32
    %c0_i32_1 = arith.constant 0 : i32
    return %c0_i32, %c0_i32_0 : i32, i32
  }
  func.func @transform_4(%arg0: i32, %arg1: i32) -> (i32, i32) {
    %c0_i32 = arith.constant 0 : i32
    %c0_i32_0 = arith.constant 0 : i32
    return %arg0, %c0_i32 : i32, i32
  }
  func.func @transform_5(%arg0: i32, %arg1: i32) -> (i32, i32) {
    %c0_i32 = arith.constant 0 : i32
    %c0_i32_0 = arith.constant 0 : i32
    return %arg0, %c0_i32 : i32, i32
  }
}

</mosaic_0001>

<llo_original>
// kernel: tpu_custom_call.1
$region0: #{tpu_custom_call.1}
  #allocation0 [shape = 'u32[]', space=smem, size = 0x4, offset = 0x4, fixed_abs, tag = 'smem constant byte address 0x4 - core index']
  #allocation1 [shape = 'u32[144,128]{1,0:T(1,128)}', space=vmem, size = 0x12000, scoped, tag = 'internal scratch']
  %s0 = inlined_call_operand.hbm [shape: f32[8,128], index: 0, kind: input, shape index: {}]
  %s1 = inlined_call_operand.hbm [shape: f32[8,32], index: 1, kind: input, shape index: {}]
  %s2 = inlined_call_operand.hbm [shape: f32[128,256], index: 2, kind: input, shape index: {}]
  %s3 = inlined_call_operand.hbm [shape: f32[32,256], index: 3, kind: input, shape index: {}]
  %s4 = inlined_call_operand.hbm [shape: f32[8,256], index: 4, kind: output, shape index: {0}]
  %s5 = inlined_call_operand.hbm [shape: f32[8,256], index: 5, kind: output, shape index: {1}]
  %6 = xla_tuple %s4, %s5
  %s7 = sld [smem:[#allocation0]]
  $region54: #{tpu_custom_call.1} parent=0
    _
  %s9 = ssub.s32 1, %s7
  %s10 = scalar_select 0, %s9, %s7
  $region1: #{tpu_custom_call.1} parent=0
    #allocation2 [shape = 'u8[4096]{0}', space=vmem, size = 0x1000, scoped, tag = 'input window, operand 0, single buffered']
    #allocation3 [shape = 's32[1]{0}', space=sflag, size = 0x4, scoped, tag = 'scoped memory for tpu_custom_call.1']
    #allocation4 [shape = 's32[1]{0}', space=sflag, size = 0x4, scoped, tag = 'scoped memory for tpu_custom_call.1']
    #allocation5 [shape = 'u8[4096]{0}', space=vmem, size = 0x1000, scoped, tag = 'input window, operand 1, single buffered']
    #allocation6 [shape = 's32[1]{0}', space=sflag, size = 0x4, scoped, tag = 'scoped memory for tpu_custom_call.1']
    #allocation7 [shape = 'u8[131072]{0}', space=vmem, size = 0x20000, scoped, tag = 'input window, operand 2, single buffered']
    #allocation8 [shape = 'u8[32768]{0}', space=vmem, size = 0x8000, scoped, tag = 'input window, operand 3, single buffered']
    #allocation9 [shape = 's32[1]{0}', space=sflag, size = 0x4, scoped, tag = 'scoped memory for tpu_custom_call.1']
    #allocation10 [shape = 'u8[8192]{0}', space=vmem, size = 0x2000, scoped, tag = 'output window, operand 0, single buffered']
    #allocation11 [shape = 'u8[8192]{0}', space=vmem, size = 0x2000, scoped, tag = 'output window, operand 1, single buffered']
    #allocation12 [shape = 's32[1]{0}', space=sflag, size = 0x4, scoped, tag = 'scoped memory for tpu_custom_call.1']
    %11 = vsyncpa [#allocation3], 0
    %12 = vsyncpa [#allocation6], 0
    %13 = vsyncpa [#allocation9], 0
    %14 = vsyncpa [#allocation4], 0
    %15 = vsyncpa [#allocation12], 0
    // Predicated region
    $region2: #{tpu_custom_call.1} parent=1 // pred_check
      _
    $region3: #{tpu_custom_call.1} parent=1 // pred_check_branch
      %17 = sbr.rel (0) target = $region5
    $region4: #{tpu_custom_call.1} parent=1 // pred_region
      %s18 = sadd.s32 0, 0
      %s20 = ssub.s32 128, 128
      %21 = vsyncadd [#allocation3], %s20
      %s22 = smul.addr %s18, 128
      %s23 = scalar_lea.hbm %s0, %s22
      %s25 = sshll.u32 [#allocation2], 4
      %s26 = int_to_ptr.vmem [resolvable:$true] %s25
      %28 = dma.hbm_to_vmem [thread:$0]  %s23, 128, %s26, [#allocation3]
    $region5: #{tpu_custom_call.1} parent=1 // pred_fallthru
      _
    // Predicated region
    $region6: #{tpu_custom_call.1} parent=1 // pred_check
      _
    $region7: #{tpu_custom_call.1} parent=1 // pred_check_branch
      %30 = sbr.rel (0) target = $region9
    $region8: #{tpu_custom_call.1} parent=1 // pred_region
      %s31 = sadd.s32 0, 0
      %s33 = ssub.s32 128, 128
      %34 = vsyncadd [#allocation6], %s33
      %s35 = smul.addr %s31, 128
      %s36 = scalar_lea.hbm %s1, %s35
      %s38 = sshll.u32 [#allocation5], 4
      %s39 = int_to_ptr.vmem [resolvable:$true] %s38
      %41 = dma.hbm_to_vmem [thread:$0]  %s36, 128, %s39, [#allocation6]
    $region9: #{tpu_custom_call.1} parent=1 // pred_fallthru
      _
    // Predicated region
    $region10: #{tpu_custom_call.1} parent=1 // pred_check
      _
    $region11: #{tpu_custom_call.1} parent=1 // pred_check_branch
      %43 = sbr.rel (0) target = $region13
    $region12: #{tpu_custom_call.1} parent=1 // pred_region
      %s45 = ssub.s32 4096, 4096
      %46 = vsyncadd [#allocation6], %s45
      %s47 = sshll.u32 [#allocation7], 4
      %s48 = int_to_ptr.vmem [resolvable:$true] %s47
      %53 = dma.hbm_to_vmem [thread:$0]  %s2, 4096, %s48, [#allocation6], 256, 256, 16
    $region13: #{tpu_custom_call.1} parent=1 // pred_fallthru
      _
    // Predicated region
    $region14: #{tpu_custom_call.1} parent=1 // pred_check
      _
    $region15: #{tpu_custom_call.1} parent=1 // pred_check_branch
      %55 = sbr.rel (0) target = $region17
    $region16: #{tpu_custom_call.1} parent=1 // pred_region
      %s57 = ssub.s32 1024, 1024
      %58 = vsyncadd [#allocation9], %s57
      %s59 = sshll.u32 [#allocation8], 4
      %s60 = int_to_ptr.vmem [resolvable:$true] %s59
      %65 = dma.hbm_to_vmem [thread:$0]  %s3, 1024, %s60, [#allocation9], 256, 256, 16
    $region17: #{tpu_custom_call.1} parent=1 // pred_fallthru
      _
    // Predicated region
    $region18: #{tpu_custom_call.1} parent=1 // pred_check
      _
    $region19: #{tpu_custom_call.1} parent=1 // pred_check_branch
      %67 = sbr.rel (0) target = $region21
    $region20: #{tpu_custom_call.1} parent=1 // pred_region
      %68 = dma.done [#allocation3], 128
    $region21: #{tpu_custom_call.1} parent=1 // pred_fallthru
      _
    // Predicated region
    $region22: #{tpu_custom_call.1} parent=1 // pred_check
      _
    $region23: #{tpu_custom_call.1} parent=1 // pred_check_branch
      %70 = sbr.rel (0) target = $region25
    $region24: #{tpu_custom_call.1} parent=1 // pred_region
      %71 = dma.done [#allocation6], 128
    $region25: #{tpu_custom_call.1} parent=1 // pred_fallthru
      _
    // Predicated region
    $region26: #{tpu_custom_call.1} parent=1 // pred_check
      _
    $region27: #{tpu_custom_call.1} parent=1 // pred_check_branch
      %73 = sbr.rel (0) target = $region29
    $region28: #{tpu_custom_call.1} parent=1 // pred_region
      %74 = dma.done [#allocation6], 4096
    $region29: #{tpu_custom_call.1} parent=1 // pred_fallthru
      _
    // Predicated region
    $region30: #{tpu_custom_call.1} parent=1 // pred_check
      _
    $region31: #{tpu_custom_call.1} parent=1 // pred_check_branch
      %76 = sbr.rel (0) target = $region33
    $region32: #{tpu_custom_call.1} parent=1 // pred_region
      %77 = dma.done [#allocation9], 1024
    $region33: #{tpu_custom_call.1} parent=1 // pred_fallthru
      _
    %s78 = sadd.s32 0, 0
    %s79 = sadd.s32 0, 0
    %p80 = scmp.eq.s32.totalorder 0, 0
    // Predicated region
    $region34: #{tpu_custom_call.1} parent=1 // pred_check
      %p81 = pneg %p80
    $region35: #{tpu_custom_call.1} parent=1 // pred_check_branch
      %83 = sbr.rel (%p81) target = $region37
    $region36: #{tpu_custom_call.1} parent=1 // pred_region
      %84 = vst [vmem:[#allocation10] sm:$0xff] 0.0
      %85 = vst [vmem:[#allocation10 + $0x8] sm:$0xff] 0.0
      %86 = vst [vmem:[#allocation11] sm:$0xff] 0.0
      %87 = vst [vmem:[#allocation11 + $0x8] sm:$0xff] 0.0
    $region37: #{tpu_custom_call.1} parent=1 // pred_fallthru
      _
    %v88 = vld [vmem:[#allocation7] sm:$0xff]
    %v89 = vld [vmem:[#allocation7 + $0x8] sm:$0xff]
    %v90 = vld [vmem:[#allocation7 + $0x10] sm:$0xff]
    %v91 = vld [vmem:[#allocation7 + $0x18] sm:$0xff]
    %v92 = vld [vmem:[#allocation7 + $0x20] sm:$0xff]
    %v93 = vld [vmem:[#allocation7 + $0x28] sm:$0xff]
    %v94 = vld [vmem:[#allocation7 + $0x30] sm:$0xff]
    %v95 = vld [vmem:[#allocation7 + $0x38] sm:$0xff]
    %v96 = vld [vmem:[#allocation7 + $0x40] sm:$0xff]
    %v97 = vld [vmem:[#allocation7 + $0x48] sm:$0xff]
    %v98 = vld [vmem:[#allocation7 + $0x50] sm:$0xff]
    %v99 = vld [vmem:[#allocation7 + $0x58] sm:$0xff]
    %v100 = vld [vmem:[#allocation7 + $0x60] sm:$0xff]
    %v101 = vld [vmem:[#allocation7 + $0x68] sm:$0xff]
    %v102 = vld [vmem:[#allocation7 + $0x70] sm:$0xff]
    %v103 = vld [vmem:[#allocation7 + $0x78] sm:$0xff]
    %v104 = vld [vmem:[#allocation7 + $0x80] sm:$0xff]
    %v105 = vld [vmem:[#allocation7 + $0x88] sm:$0xff]
    %v106 = vld [vmem:[#allocation7 + $0x90] sm:$0xff]
    %v107 = vld [vmem:[#allocation7 + $0x98] sm:$0xff]
    %v108 = vld [vmem:[#allocation7 + $0xa0] sm:$0xff]
    %v109 = vld [vmem:[#allocation7 + $0xa8] sm:$0xff]
    %v110 = vld [vmem:[#allocation7 + $0xb0] sm:$0xff]
    %v111 = vld [vmem:[#allocation7 + $0xb8] sm:$0xff]
    %v112 = vld [vmem:[#allocation7 + $0xc0] sm:$0xff]
    %v113 = vld [vmem:[#allocation7 + $0xc8] sm:$0xff]
    %v114 = vld [vmem:[#allocation7 + $0xd0] sm:$0xff]
    %v115 = vld [vmem:[#allocation7 + $0xd8] sm:$0xff]
    %v116 = vld [vmem:[#allocation7 + $0xe0] sm:$0xff]
    %v117 = vld [vmem:[#allocation7 + $0xe8] sm:$0xff]
    %v118 = vld [vmem:[#allocation7 + $0xf0] sm:$0xff]
    %v119 = vld [vmem:[#allocation7 + $0xf8] sm:$0xff]
    %v120 = vld [vmem:[#allocation8] sm:$0xff]
    %v121 = vld [vmem:[#allocation8 + $0x8] sm:$0xff]
    %v122 = vld [vmem:[#allocation8 + $0x10] sm:$0xff]
    %v123 = vld [vmem:[#allocation8 + $0x18] sm:$0xff]
    %v124 = vld [vmem:[#allocation8 + $0x20] sm:$0xff]
    %v125 = vld [vmem:[#allocation8 + $0x28] sm:$0xff]
    %v126 = vld [vmem:[#allocation8 + $0x30] sm:$0xff]
    %v127 = vld [vmem:[#allocation8 + $0x38] sm:$0xff]
    %v128 = vld [vmem:[#allocation2] sm:$0xff]
    %v129 = vld [vmem:[#allocation5] sm:$0xff]
    %vm130 = vcmask 261120
    %v132 = vsel %vm130, %v129, 0
    %134 = vmatprep.subr.mxu0 0.0
    %135 = vmatpush1.msra.mxu0 0.0
    %136 = vmatprep.subr.mxu0 0.0
    %137 = vmatpush1.msra.mxu0 0.0
    %138 = vmatprep.subr.mxu0 0.0
    %139 = vmatpush1.msra.mxu0 0.0
    %140 = vmatprep.subr.mxu0 0.0
    %141 = vmatpush1.msra.mxu0 0.0
    %142 = vmatprep.subr.mxu0 0.0
    %143 = vmatpush1.msra.mxu0 0.0
    %144 = vmatprep.subr.mxu0 0.0
    %145 = vmatpush1.msra.mxu0 0.0
    %146 = vmatprep.subr.mxu0 0.0
    %147 = vmatpush1.msra.mxu0 0.0
    %148 = vmatprep.subr.mxu0 0.0
    %149 = vmatpush1.msra.mxu0 0.0
    %150 = vmatprep.subr.mxu0 0.0
    %151 = vmatpush1.msra.mxu0 0.0
    %152 = vmatprep.subr.mxu0 0.0
    %153 = vmatpush1.msra.mxu0 0.0
    %154 = vmatprep.subr.mxu0 0.0
    %155 = vmatpush1.msra.mxu0 0.0
    %156 = vmatprep.subr.mxu0 0.0
    %157 = vmatpush1.msra.mxu0 0.0
    %158 = vmatprep.subr.mxu0 %v127
    %159 = vmatpush1.msra.mxu0 %v126
    %160 = vmatprep.subr.mxu0 %v125
    %161 = vmatpush1.msra.mxu0 %v124
    %162 = vmatprep.subr.mxu0 %v123
    %163 = vmatpush1.msra.mxu0 %v122
    %164 = vmatprep.subr.mxu0 %v121
    %165 = vmatpush1.msra.mxu0 %v120
    %166 = vmatprep.subr.mxu0 0.0
    %167 = vmatpush2.msra.mxu0 0.0
    %168 = vmatprep.subr.mxu0 0.0
    %169 = vmatpush2.msra.mxu0 0.0
    %170 = vmatprep.subr.mxu0 0.0
    %171 = vmatpush2.msra.mxu0 0.0
    %172 = vmatprep.subr.mxu0 0.0
    %173 = vmatpush2.msra.mxu0 0.0
    %174 = vmatprep.subr.mxu0 0.0
    %175 = vmatpush2.msra.mxu0 0.0
    %176 = vmatprep.subr.mxu0 0.0
    %177 = vmatpush2.msra.mxu0 0.0
    %178 = vmatprep.subr.mxu0 0.0
    %179 = vmatpush2.msra.mxu0 0.0
    %180 = vmatprep.subr.mxu0 0.0
    %181 = vmatpush2.msra.mxu0 0.0
    %182 = vmatprep.subr.mxu0 0.0
    %183 = vmatpush2.msra.mxu0 0.0
    %184 = vmatprep.subr.mxu0 0.0
    %185 = vmatpush2.msra.mxu0 0.0
    %186 = vmatprep.subr.mxu0 0.0
    %187 = vmatpush2.msra.mxu0 0.0
    %188 = vmatprep.subr.mxu0 0.0
    %189 = vmatpush2.msra.mxu0 0.0
    %190 = vmatprep.subr.mxu0 0.0
    %191 = vmatpush2.msra.mxu0 0.0
    %192 = vmatprep.subr.mxu0 0.0
    %193 = vmatpush2.msra.mxu0 0.0
    %194 = vmatprep.subr.mxu0 0.0
    %195 = vmatpush2.msra.mxu0 0.0
    %196 = vmatprep.subr.mxu0 0.0
    %197 = vmatpush2.msra.mxu0 0.0
    %198 = vmatprep.mubr.f32.mxu0 0.0
    %199 = vmatmul.mubr.f32.gmra.mxu0 %v132
    %v200 = vpop.f32.mrf.mxu0
    %v201 = vadd.f32 0.0, %v200
    %v202 = vpop.f32.mrf.mxu0
    %v203 = vadd.f32 0.0, %v202
    %204 = vdwg.mxu0
    %205 = vmatprep.subr.mxu0 %v119
    %206 = vmatpush1.msra.mxu0 %v118
    %207 = vmatprep.subr.mxu0 %v117
    %208 = vmatpush1.msra.mxu0 %v116
    %209 = vmatprep.subr.mxu0 %v115
    %210 = vmatpush1.msra.mxu0 %v114
    %211 = vmatprep.subr.mxu0 %v113
    %212 = vmatpush1.msra.mxu0 %v112
    %213 = vmatprep.subr.mxu0 %v111
    %214 = vmatpush1.msra.mxu0 %v110
    %215 = vmatprep.subr.mxu0 %v109
    %216 = vmatpush1.msra.mxu0 %v108
    %217 = vmatprep.subr.mxu0 %v107
    %218 = vmatpush1.msra.mxu0 %v106
    %219 = vmatprep.subr.mxu0 %v105
    %220 = vmatpush1.msra.mxu0 %v104
    %221 = vmatprep.subr.mxu0 %v103
    %222 = vmatpush1.msra.mxu0 %v102
    %223 = vmatprep.subr.mxu0 %v101
    %224 = vmatpush1.msra.mxu0 %v100
    %225 = vmatprep.subr.mxu0 %v99
    %226 = vmatpush1.msra.mxu0 %v98
    %227 = vmatprep.subr.mxu0 %v97
    %228 = vmatpush1.msra.mxu0 %v96
    %229 = vmatprep.subr.mxu0 %v95
    %230 = vmatpush1.msra.mxu0 %v94
    %231 = vmatprep.subr.mxu0 %v93
    %232 = vmatpush1.msra.mxu0 %v92
    %233 = vmatprep.subr.mxu0 %v91
    %234 = vmatpush1.msra.mxu0 %v90
    %235 = vmatprep.subr.mxu0 %v89
    %236 = vmatpush1.msra.mxu0 %v88
    %237 = vmatprep.subr.mxu0 0.0
    %238 = vmatpush2.msra.mxu0 0.0
    %239 = vmatprep.subr.mxu0 0.0
    %240 = vmatpush2.msra.mxu0 0.0
    %241 = vmatprep.subr.mxu0 0.0
    %242 = vmatpush2.msra.mxu0 0.0
    %243 = vmatprep.subr.mxu0 0.0
    %244 = vmatpush2.msra.mxu0 0.0
    %245 = vmatprep.subr.mxu0 0.0
    %246 = vmatpush2.msra.mxu0 0.0
    %247 = vmatprep.subr.mxu0 0.0
    %248 = vmatpush2.msra.mxu0 0.0
    %249 = vmatprep.subr.mxu0 0.0
    %250 = vmatpush2.msra.mxu0 0.0
    %251 = vmatprep.subr.mxu0 0.0
    %252 = vmatpush2.msra.mxu0 0.0
    %253 = vmatprep.subr.mxu0 0.0
    %254 = vmatpush2.msra.mxu0 0.0
    %255 = vmatprep.subr.mxu0 0.0
    %256 = vmatpush2.msra.mxu0 0.0
    %257 = vmatprep.subr.mxu0 0.0
    %258 = vmatpush2.msra.mxu0 0.0
    %259 = vmatprep.subr.mxu0 0.0
    %260 = vmatpush2.msra.mxu0 0.0
    %261 = vmatprep.subr.mxu0 0.0
    %262 = vmatpush2.msra.mxu0 0.0
    %263 = vmatprep.subr.mxu0 0.0
    %264 = vmatpush2.msra.mxu0 0.0
    %265 = vmatprep.subr.mxu0 0.0
    %266 = vmatpush2.msra.mxu0 0.0
    %267 = vmatprep.subr.mxu0 0.0
    %268 = vmatpush2.msra.mxu0 0.0
    %269 = vmatprep.mubr.f32.mxu0 0.0
    %270 = vmatmul.mubr.f32.gmra.mxu0 %v128
    %v271 = vpop.f32.mrf.mxu0
    %v272 = vadd.f32 %v201, %v271
    %v273 = vpop.f32.mrf.mxu0
    %v274 = vadd.f32 %v203, %v273
    %275 = vdwg.mxu0
    %v276 = vrot.slane %v272, 4
    %v277 = vadd.f32 %v272, %v276
    %v278 = vrot.slane %v277, 2
    %v279 = vadd.f32 %v277, %v278
    %v280 = vrot.slane %v279, 1
    %v281 = vadd.f32 %v279, %v280
    %v282 = vrot.slane %v274, 4
    %v283 = vadd.f32 %v274, %v282
    %v284 = vrot.slane %v283, 2
    %v285 = vadd.f32 %v283, %v284
    %v286 = vrot.slane %v285, 1
    %v287 = vadd.f32 %v285, %v286
    %v288 = vadd.f32 %v281, 0.0
    %v289 = vadd.f32 %v287, 0.0
    %v290 = vmul.f32 %v272, %v272
    %v291 = vmul.f32 %v274, %v274
    %v292 = vrot.slane %v290, 4
    %v293 = vadd.f32 %v290, %v292
    %v294 = vrot.slane %v293, 2
    %v295 = vadd.f32 %v293, %v294
    %v296 = vrot.slane %v295, 1
    %v297 = vadd.f32 %v295, %v296
    %v298 = vrot.slane %v291, 4
    %v299 = vadd.f32 %v291, %v298
    %v300 = vrot.slane %v299, 2
    %v301 = vadd.f32 %v299, %v300
    %v302 = vrot.slane %v301, 1
    %v303 = vadd.f32 %v301, %v302
    %v304 = vadd.f32 %v297, 0.0
    %v305 = vadd.f32 %v303, 0.0
    %v306 = vld [vmem:[#allocation10] ss:$8 sm:$0x3]
    %v309 = vcombine.low %v288, %v289
    %v311 = vunpack.c.l.s4 1966171168
    %v312 = vunpack.c.0.s8 %v311
    %v313 = vlaneseq
    %v314 = vshrl.u32 %v313, 7
    %v315 = vsub.s32 %v312, %v314
    %v316 = vrot.slane %v309, %v315
    %v318 = vunpack.c.l.s4 1966171168
    %v319 = vunpack.c.0.s8 %v318
    %v320 = vlaneseq
    %v321 = vshrl.u32 %v320, 7
    %v322 = vsub.s32 %v319, %v321
    %v323 = vrot.slane %v316, %v322
    %v325 = vadd.f32 %v306, %v323
    %v326 = vlaneseq
    %vm327 = vcmp.ge.s32.totalorder %v326, 0
    %vm328 = vcmp.lt.s32.totalorder %v326, 256
    %vm329 = vmand %vm327, %vm328
    %330 = vst.msk [vmem:[#allocation10] ss:$8 sm:$0x3] %vm329, %v325
    %331 = vst.msk [vmem:[#allocation10] ss:$8 sm:$0x0] %vm329, %v325
    %v332 = vld [vmem:[#allocation11] ss:$8 sm:$0x3]
    %v335 = vcombine.low %v304, %v305
    %v337 = vunpack.c.l.s4 1966171168
    %v338 = vunpack.c.0.s8 %v337
    %v339 = vlaneseq
    %v340 = vshrl.u32 %v339, 7
    %v341 = vsub.s32 %v338, %v340
    %v342 = vrot.slane %v335, %v341
    %v344 = vunpack.c.l.s4 1966171168
    %v345 = vunpack.c.0.s8 %v344
    %v346 = vlaneseq
    %v347 = vshrl.u32 %v346, 7
    %v348 = vsub.s32 %v345, %v347
    %v349 = vrot.slane %v342, %v348
    %v351 = vadd.f32 %v332, %v349
    %352 = vst.msk [vmem:[#allocation11] ss:$8 sm:$0x3] %vm329, %v351
    %353 = vst.msk [vmem:[#allocation11] ss:$8 sm:$0x0] %vm329, %v351
    // Predicated region
    $region38: #{tpu_custom_call.1} parent=1 // pred_check
      _
    $region39: #{tpu_custom_call.1} parent=1 // pred_check_branch
      %355 = sbr.rel (0) target = $region41
    $region40: #{tpu_custom_call.1} parent=1 // pred_region
      %s357 = ssub.s32 256, 256
      %358 = vsyncadd [#allocation4], %s357
      %s360 = sshll.u32 [#allocation10], 4
      %s361 = int_to_ptr.vmem [resolvable:$true] %s360
      %363 = dma.vmem_to_hbm [thread:$0]  %s361, 256, %s4, [#allocation4]
    $region41: #{tpu_custom_call.1} parent=1 // pred_fallthru
      _
    // Predicated region
    $region42: #{tpu_custom_call.1} parent=1 // pred_check
      _
    $region43: #{tpu_custom_call.1} parent=1 // pred_check_branch
      %365 = sbr.rel (0) target = $region45
    $region44: #{tpu_custom_call.1} parent=1 // pred_region
      %s367 = ssub.s32 256, 256
      %368 = vsyncadd [#allocation12], %s367
      %s370 = sshll.u32 [#allocation11], 4
      %s371 = int_to_ptr.vmem [resolvable:$true] %s370
      %373 = dma.vmem_to_hbm [thread:$0]  %s371, 256, %s5, [#allocation12]
    $region45: #{tpu_custom_call.1} parent=1 // pred_fallthru
      _
    // Predicated region
    $region46: #{tpu_custom_call.1} parent=1 // pred_check
      _
    $region47: #{tpu_custom_call.1} parent=1 // pred_check_branch
      %375 = sbr.rel (0) target = $region49
    $region48: #{tpu_custom_call.1} parent=1 // pred_region
      %376 = dma.done [#allocation4], 256
    $region49: #{tpu_custom_call.1} parent=1 // pred_fallthru
      _
    // Predicated region
    $region50: #{tpu_custom_call.1} parent=1 // pred_check
      _
    $region51: #{tpu_custom_call.1} parent=1 // pred_check_branch
      %378 = sbr.rel (0) target = $region53
    $region52: #{tpu_custom_call.1} parent=1 // pred_region
      %379 = dma.done [#allocation12], 256
    $region53: #{tpu_custom_call.1} parent=1 // pred_fallthru
      _
    %380 = vsyncpa [#allocation3], 1
    %381 = vsyncpa [#allocation6], 1
    %382 = vsyncpa [#allocation9], 1
    %383 = vsyncpa [#allocation4], 1
    %384 = vsyncpa [#allocation12], 1

</llo_original>
